<compile_context>
chip_gen: v7x
topology: tpu7x:2x2x1
jax: 0.10.0
libtpu: 0.0.40
codegen_flags: <defaults>
</compile_context>

<pallas_src>
import functools

import jax
import jax.numpy as jnp
from jax.experimental import pallas as pl
from jax.experimental.pallas import tpu as pltpu


def _round_up(x, m):
    return ((x + m - 1) // m) * m


def _vmem_capacity_bytes():
    """Physical VMEM per core; conservative 64 MiB fallback if the query fails."""
    try:
        info = pltpu.get_tpu_info()
        cap = getattr(info, "vmem_capacity_bytes", None)
        if cap:
            return int(cap)
    except Exception:
        pass
    return 64 << 20


def _choose_tile_m(n_tok, desired):
    """Token tile: multiple of 16 (bf16 sublane packing), at most `desired`.
    Tiny inputs get a single tile (no forced grid split)."""
    desired = max(16, _round_up(desired, 16))
    n16 = _round_up(max(n_tok, 1), 16)
    if n16 <= desired:
        return n16
    return desired


def _dummy_block_kernel(x_ref,
                        bw1_w_ref, bw2_w_ref, ew1_w_ref, ew2_w_ref,
                        b_wide_ref, b_narrow_ref,
                        o_ref):
    """Fused 4-layer linear chain: bw1 -> bw2 -> experts.w1 -> experts.w2.

    Weights (in, out) and x are already in the compute dtype (bf16); all dots
    accumulate in f32 and the bias adds are f32.
    """
    cdt = bw1_w_ref.dtype
    x = x_ref[...]

    # bw1: (tm, Hp) @ (Hp, Fp) + (1, Fp)
    h1 = jnp.dot(x, bw1_w_ref[...],
                 preferred_element_type=jnp.float32) + b_wide_ref[0:1, :]
    # bw2: (tm, Fp) @ (Fp, Hp) + (1, Hp)
    y = jnp.dot(h1.astype(cdt), bw2_w_ref[...],
                preferred_element_type=jnp.float32) + b_narrow_ref[0:1, :]
    # experts.w1: (tm, Hp) @ (Hp, Fp) + (1, Fp)
    h2 = jnp.dot(y.astype(cdt), ew1_w_ref[...],
                 preferred_element_type=jnp.float32) + b_wide_ref[1:2, :]
    # experts.w2: (tm, Fp) @ (Fp, Hp) + (1, Hp)
    out = jnp.dot(h2.astype(cdt), ew2_w_ref[...],
                  preferred_element_type=jnp.float32) + b_narrow_ref[1:2, :]

    o_ref[...] = out.astype(o_ref.dtype)


def prepare_params(params, compute_dtype=jnp.bfloat16):
    """Pad weights/biases to lane-dense (multiple-of-128) shapes, cast weights to the
    compute dtype once, and pack the four biases into two stacked f32 arrays."""
    H, F = params["bw1_w"].shape          # F == 2*H
    H_pad = _round_up(H, 128)
    F_pad = _round_up(F, 128)

    def pad_w(w, rows, cols):
        return jnp.pad(w, ((0, rows - w.shape[0]), (0, cols - w.shape[1]))
                       ).astype(compute_dtype)

    def pad_b(b, cols):
        return jnp.pad(b, ((0, 0), (0, cols - b.shape[1]))).astype(jnp.float32)

    return dict(
        bw1_w=pad_w(params["bw1_w"], H_pad, F_pad),
        bw2_w=pad_w(params["bw2_w"], F_pad, H_pad),
        ew1_w=pad_w(params["ew1_w"], H_pad, F_pad),
        ew2_w=pad_w(params["ew2_w"], F_pad, H_pad),
        b_wide=jnp.concatenate(
            [pad_b(params["bw1_b"], F_pad), pad_b(params["ew1_b"], F_pad)], axis=0),
        b_narrow=jnp.concatenate(
            [pad_b(params["bw2_b"], H_pad), pad_b(params["ew2_b"], H_pad)], axis=0),
    )


@functools.partial(jax.jit,
                   static_argnames=("tile_m", "vmem_cap", "single_buffer_weights"))
def _forward_pallas(x, prepared, *, tile_m, vmem_cap, single_buffer_weights):
    orig_shape = x.shape
    orig_dtype = x.dtype
    H = orig_shape[-1]
    x2d = x.reshape(-1, H)
    n_tok = x2d.shape[0]

    H_pad, F_pad = prepared["bw1_w"].shape
    cdt = prepared["bw1_w"].dtype
    w_itemsize = jnp.dtype(cdt).itemsize
    o_itemsize = jnp.dtype(orig_dtype).itemsize

    n_pad = _round_up(max(n_tok, 1), tile_m)
    # Cast x once to the compute dtype (bf16) and zero-pad tokens / hidden.
    x_p = jnp.pad(x2d.astype(cdt), ((0, n_pad - n_tok), (0, H_pad - H)))

    # --- VMEM budget (static Python arithmetic) ---
    w_bufs = 1 if single_buffer_weights else 2
    w_bytes = 4 * H_pad * F_pad * w_itemsize
    b_bytes = (2 * F_pad + 2 * H_pad) * 4
    x_bytes = 2 * tile_m * H_pad * w_itemsize          # double-buffered bf16 x tiles
    o_bytes = 2 * tile_m * H_pad * o_itemsize          # double-buffered out tiles
    inter_bytes = tile_m * (2 * F_pad + 2 * H_pad) * 4  # f32 intermediates
    vmem_est = w_bufs * (w_bytes + b_bytes) + x_bytes + o_bytes + inter_bytes + (4 << 20)
    vmem_limit = int(min(max(vmem_est, 32 << 20), int(vmem_cap * 0.85)))

    grid = (n_pad // tile_m,)

    def const_spec(arr):
        if single_buffer_weights:
            return pl.BlockSpec(arr.shape, lambda i: (0, 0),
                                pipeline_mode=pl.Buffered(1))
        return pl.BlockSpec(arr.shape, lambda i: (0, 0))

    cost = pl.CostEstimate(
        flops=8 * n_pad * H_pad * F_pad,
        transcendentals=0,
        bytes_accessed=int(w_bytes + b_bytes
                           + n_pad * H_pad * (w_itemsize + o_itemsize)),
    )

    out_p = pl.pallas_call(
        _dummy_block_kernel,
        out_shape=jax.ShapeDtypeStruct((n_pad, H_pad), orig_dtype),
        grid_spec=pltpu.PrefetchScalarGridSpec(
            num_scalar_prefetch=0,
            grid=grid,
            in_specs=[
                pl.BlockSpec((tile_m, H_pad), lambda i: (i, 0)),   # streaming x rows
                const_spec(prepared["bw1_w"]), const_spec(prepared["bw2_w"]),
                const_spec(prepared["ew1_w"]), const_spec(prepared["ew2_w"]),
                const_spec(prepared["b_wide"]), const_spec(prepared["b_narrow"]),
            ],
            out_specs=pl.BlockSpec((tile_m, H_pad), lambda i: (i, 0)),
        ),
        compiler_params=pltpu.CompilerParams(
            dimension_semantics=("parallel",),
            vmem_limit_bytes=vmem_limit),
        cost_estimate=cost,
    )(x_p,
      prepared["bw1_w"], prepared["bw2_w"],
      prepared["ew1_w"], prepared["ew2_w"],
      prepared["b_wide"], prepared["b_narrow"])

    return out_p[:n_tok, :H].reshape(orig_shape)


@jax.jit
def _forward_xla(x, prepared):
    """XLA-fused fallback for hidden sizes whose weights would not fit in VMEM."""
    H = x.shape[-1]
    H_pad = prepared["bw1_w"].shape[0]
    cdt = prepared["bw1_w"].dtype
    x2d = jnp.pad(x.reshape(-1, H).astype(cdt), ((0, 0), (0, H_pad - H)))

    def lin(a, w, b):
        return jnp.dot(a.astype(cdt), w, preferred_element_type=jnp.float32) + b

    h1 = lin(x2d, prepared["bw1_w"], prepared["b_wide"][0:1])
    y = lin(h1, prepared["bw2_w"], prepared["b_narrow"][0:1])
    h2 = lin(y, prepared["ew1_w"], prepared["b_wide"][1:2])
    out = lin(h2, prepared["ew2_w"], prepared["b_narrow"][1:2])
    return out[:, :H].reshape(x.shape).astype(x.dtype)


def dummy_block_forward(x, prepared, desired_tile_m=None):
    """x: (..., H) float32. prepared: output of prepare_params()."""
    vmem_cap = _vmem_capacity_bytes()
    if desired_tile_m is None:
        # Smaller tiles on small-VMEM parts (v7x: 64 MiB/TC); big tiles on v5e/v6e.
        desired_tile_m = 256 if vmem_cap < (100 << 20) else 512

    H_pad, F_pad = prepared["bw1_w"].shape
    w_itemsize = jnp.dtype(prepared["bw1_w"].dtype).itemsize
    w_bytes = 4 * H_pad * F_pad * w_itemsize
    if w_bytes > 0.7 * vmem_cap:
        # TODO(synk): streamed-weight Pallas kernel (grid K/N axis + VMEM accumulator)
        # for hidden sizes whose resident weights exceed VMEM; XLA fallback for now.
        return _forward_xla(x, prepared)

    n_tok = 1
    for d in x.shape[:-1]:
        n_tok *= d
    tile_m = _choose_tile_m(n_tok, desired_tile_m)

    try:
        return _forward_pallas(x, prepared, tile_m=tile_m, vmem_cap=vmem_cap,
                               single_buffer_weights=True)
    except Exception:
        # Installed JAX may not support pl.Buffered(1); retry with default buffering.
        return _forward_pallas(x, prepared, tile_m=tile_m, vmem_cap=vmem_cap,
                               single_buffer_weights=False)


def init_params(key, hidden_size):
    """Deterministic init mimicking torch.nn.Linear (uniform(-1/sqrt(fan_in), +))."""
    def linear(key, fan_in, fan_out):
        kw, kb = jax.random.split(key)
        bound = 1.0 / jnp.sqrt(fan_in)
        # stored as (in, out) = transpose of PyTorch weight
        w = jax.random.uniform(kw, (fan_in, fan_out), jnp.float32, -bound, bound)
        b = jax.random.uniform(kb, (1, fan_out), jnp.float32, -bound, bound)
        return w, b

    k1, k2, k3, k4 = jax.random.split(key, 4)
    bw1_w, bw1_b = linear(k1, hidden_size, hidden_size * 2)
    bw2_w, bw2_b = linear(k2, hidden_size * 2, hidden_size)
    ew1_w, ew1_b = linear(k3, hidden_size, hidden_size * 2)
    ew2_w, ew2_b = linear(k4, hidden_size * 2, hidden_size)
    return dict(bw1_w=bw1_w, bw1_b=bw1_b, bw2_w=bw2_w, bw2_b=bw2_b,
                ew1_w=ew1_w, ew1_b=ew1_b, ew2_w=ew2_w, ew2_b=ew2_b)


def reference_forward(x, p):
    """Plain-JAX f32 reference of DummyBlock.forward."""
    h1 = x @ p["bw1_w"] + p["bw1_b"][0]
    y = h1 @ p["bw2_w"] + p["bw2_b"][0]
    h2 = y @ p["ew1_w"] + p["ew1_b"][0]
    return h2 @ p["ew2_w"] + p["ew2_b"][0]


def reference_forward_lowp(x, p, dtype):
    """Reference with the same bf16-operand / f32-accumulate numerics as the kernel."""
    def lin(a, w, b):
        return jnp.dot(a.astype(dtype), w.astype(dtype),
                       preferred_element_type=jnp.float32) + b[0]
    h1 = lin(x, p["bw1_w"], p["bw1_b"])
    y = lin(h1, p["bw2_w"], p["bw2_b"])
    h2 = lin(y, p["ew1_w"], p["ew1_b"])
    return lin(h2, p["ew2_w"], p["ew2_b"])


if __name__ == "__main__":
    hidden_size = 32
    batch, seq = 2, 8

    key = jax.random.PRNGKey(0)
    kx, kp = jax.random.split(key)
    x = jax.random.normal(kx, (batch, seq, hidden_size), dtype=jnp.float32)
    params = init_params(kp, hidden_size)

    prepared = prepare_params(params, compute_dtype=jnp.bfloat16)
    out = dummy_block_forward(x, prepared)
    out = jax.block_until_ready(out)

    ref_lowp = reference_forward_lowp(x, params, jnp.bfloat16)
    ref_f32 = reference_forward(x, params)

    assert out.shape == (batch, seq, hidden_size)
    # Tight check against a reference with identical bf16/f32 numerics.
    assert jnp.allclose(out, ref_lowp, atol=2e-2, rtol=2e-2), "mismatch vs bf16 reference"
    # Looser check against the pure-f32 composition (bf16 rounding differences only).
    assert jnp.allclose(out, ref_f32, atol=1e-1, rtol=1e-1), "mismatch vs f32 reference"

    print("KERNEL_OK")
</pallas_src>

<mosaic_0001>
module attributes {stable_mosaic.version = 11 : i64} {
  func.func @_dummy_block_kernel(%arg0: i32, %arg1: memref<16x128xbf16, #tpu.memory_space<vmem>>, %arg2: memref<128x128xbf16, #tpu.memory_space<vmem>>, %arg3: memref<128x128xbf16, #tpu.memory_space<vmem>>, %arg4: memref<128x128xbf16, #tpu.memory_space<vmem>>, %arg5: memref<128x128xbf16, #tpu.memory_space<vmem>>, %arg6: memref<2x128xf32, #tpu.memory_space<vmem>>, %arg7: memref<2x128xf32, #tpu.memory_space<vmem>>, %arg8: memref<16x128xf32, #tpu.memory_space<vmem>>) attributes {dimension_semantics = [#tpu.dimension_semantics<parallel>], iteration_bounds = array<i64: 1>, scalar_prefetch = 0 : i64, scratch_operands = 0 : i64, tpu.core_type = #tpu.core_type<tc>, window_params = [{transform_indices = @transform_0, window_bounds = array<i64: 16, 128>}, {pipeline_mode = #tpu.pipeline_mode<synchronous>, transform_indices = @transform_1, window_bounds = array<i64: 128, 128>}, {pipeline_mode = #tpu.pipeline_mode<synchronous>, transform_indices = @transform_2, window_bounds = array<i64: 128, 128>}, {pipeline_mode = #tpu.pipeline_mode<synchronous>, transform_indices = @transform_3, window_bounds = array<i64: 128, 128>}, {pipeline_mode = #tpu.pipeline_mode<synchronous>, transform_indices = @transform_4, window_bounds = array<i64: 128, 128>}, {pipeline_mode = #tpu.pipeline_mode<synchronous>, transform_indices = @transform_5, window_bounds = array<i64: 2, 128>}, {pipeline_mode = #tpu.pipeline_mode<synchronous>, transform_indices = @transform_6, window_bounds = array<i64: 2, 128>}, {transform_indices = @transform_7, window_bounds = array<i64: 16, 128>}]} {
    %c0 = arith.constant 0 : index
    %c0_0 = arith.constant 0 : index
    %0 = vector.load %arg1[%c0, %c0_0] : memref<16x128xbf16, #tpu.memory_space<vmem>>, vector<16x128xbf16>
    %c0_1 = arith.constant 0 : index
    %c0_2 = arith.constant 0 : index
    %1 = vector.load %arg2[%c0_1, %c0_2] : memref<128x128xbf16, #tpu.memory_space<vmem>>, vector<128x128xbf16>
    %cst = arith.constant dense<0.000000e+00> : vector<16x128xf32>
    %2 = tpu.matmul %0, %1, %cst {dimension_numbers = #tpu.dot_dimension_numbers<[1], [0], [0], [1], [0, 0, 1, 1], [], []>} : vector<16x128xbf16>, vector<128x128xbf16>, vector<16x128xf32> -> vector<16x128xf32>
    %c0_3 = arith.constant 0 : index
    %c0_4 = arith.constant 0 : index
    %3 = vector.load %arg6[%c0_3, %c0_4] : memref<2x128xf32, #tpu.memory_space<vmem>>, vector<1x128xf32>
    %4 = vector.broadcast %3 : vector<1x128xf32> to vector<16x128xf32>
    %5 = arith.addf %2, %4 : vector<16x128xf32>
    %6 = arith.truncf %5 : vector<16x128xf32> to vector<16x128xbf16>
    %c0_5 = arith.constant 0 : index
    %c0_6 = arith.constant 0 : index
    %7 = vector.load %arg3[%c0_5, %c0_6] : memref<128x128xbf16, #tpu.memory_space<vmem>>, vector<128x128xbf16>
    %cst_7 = arith.constant dense<0.000000e+00> : vector<16x128xf32>
    %8 = tpu.matmul %6, %7, %cst_7 {dimension_numbers = #tpu.dot_dimension_numbers<[1], [0], [0], [1], [0, 0, 1, 1], [], []>} : vector<16x128xbf16>, vector<128x128xbf16>, vector<16x128xf32> -> vector<16x128xf32>
    %c0_8 = arith.constant 0 : index
    %c0_9 = arith.constant 0 : index
    %9 = vector.load %arg7[%c0_8, %c0_9] : memref<2x128xf32, #tpu.memory_space<vmem>>, vector<1x128xf32>
    %10 = vector.broadcast %9 : vector<1x128xf32> to vector<16x128xf32>
    %11 = arith.addf %8, %10 : vector<16x128xf32>
    %12 = arith.truncf %11 : vector<16x128xf32> to vector<16x128xbf16>
    %c0_10 = arith.constant 0 : index
    %c0_11 = arith.constant 0 : index
    %13 = vector.load %arg4[%c0_10, %c0_11] : memref<128x128xbf16, #tpu.memory_space<vmem>>, vector<128x128xbf16>
    %cst_12 = arith.constant dense<0.000000e+00> : vector<16x128xf32>
    %14 = tpu.matmul %12, %13, %cst_12 {dimension_numbers = #tpu.dot_dimension_numbers<[1], [0], [0], [1], [0, 0, 1, 1], [], []>} : vector<16x128xbf16>, vector<128x128xbf16>, vector<16x128xf32> -> vector<16x128xf32>
    %c1 = arith.constant 1 : index
    %c0_13 = arith.constant 0 : index
    %15 = vector.load %arg6[%c1, %c0_13] : memref<2x128xf32, #tpu.memory_space<vmem>>, vector<1x128xf32>
    %16 = vector.broadcast %15 : vector<1x128xf32> to vector<16x128xf32>
    %17 = arith.addf %14, %16 : vector<16x128xf32>
    %18 = arith.truncf %17 : vector<16x128xf32> to vector<16x128xbf16>
    %c0_14 = arith.constant 0 : index
    %c0_15 = arith.constant 0 : index
    %19 = vector.load %arg5[%c0_14, %c0_15] : memref<128x128xbf16, #tpu.memory_space<vmem>>, vector<128x128xbf16>
    %cst_16 = arith.constant dense<0.000000e+00> : vector<16x128xf32>
    %20 = tpu.matmul %18, %19, %cst_16 {dimension_numbers = #tpu.dot_dimension_numbers<[1], [0], [0], [1], [0, 0, 1, 1], [], []>} : vector<16x128xbf16>, vector<128x128xbf16>, vector<16x128xf32> -> vector<16x128xf32>
    %c1_17 = arith.constant 1 : index
    %c0_18 = arith.constant 0 : index
    %21 = vector.load %arg7[%c1_17, %c0_18] : memref<2x128xf32, #tpu.memory_space<vmem>>, vector<1x128xf32>
    %22 = vector.broadcast %21 : vector<1x128xf32> to vector<16x128xf32>
    %23 = arith.addf %20, %22 : vector<16x128xf32>
    %c0_19 = arith.constant 0 : index
    %c0_20 = arith.constant 0 : index
    %24 = vector.load %arg8[%c0_19, %c0_20] : memref<16x128xf32, #tpu.memory_space<vmem>>, vector<16x128xf32>
    tpu.vector_store %arg8[%c0_19, %c0_20], %23 {strides = array<i32>} : memref<16x128xf32, #tpu.memory_space<vmem>>, vector<16x128xf32>,
    return
  }
  func.func @transform_0(%arg0: i32) -> (i32, i32) {
    %c0_i32 = arith.constant 0 : i32
    %c0_i32_0 = arith.constant 0 : i32
    return %arg0, %c0_i32 : i32, i32
  }
  func.func @transform_1(%arg0: i32) -> (i32, i32) {
    %c0_i32 = arith.constant 0 : i32
    %c0_i32_0 = arith.constant 0 : i32
    %c0_i32_1 = arith.constant 0 : i32
    return %c0_i32, %c0_i32_0 : i32, i32
  }
  func.func @transform_2(%arg0: i32) -> (i32, i32) {
    %c0_i32 = arith.constant 0 : i32
    %c0_i32_0 = arith.constant 0 : i32
    %c0_i32_1 = arith.constant 0 : i32
    return %c0_i32, %c0_i32_0 : i32, i32
  }
  func.func @transform_3(%arg0: i32) -> (i32, i32) {
    %c0_i32 = arith.constant 0 : i32
    %c0_i32_0 = arith.constant 0 : i32
    %c0_i32_1 = arith.constant 0 : i32
    return %c0_i32, %c0_i32_0 : i32, i32
  }
  func.func @transform_4(%arg0: i32) -> (i32, i32) {
    %c0_i32 = arith.constant 0 : i32
    %c0_i32_0 = arith.constant 0 : i32
    %c0_i32_1 = arith.constant 0 : i32
    return %c0_i32, %c0_i32_0 : i32, i32
  }
  func.func @transform_5(%arg0: i32) -> (i32, i32) {
    %c0_i32 = arith.constant 0 : i32
    %c0_i32_0 = arith.constant 0 : i32
    %c0_i32_1 = arith.constant 0 : i32
    return %c0_i32, %c0_i32_0 : i32, i32
  }
  func.func @transform_6(%arg0: i32) -> (i32, i32) {
    %c0_i32 = arith.constant 0 : i32
    %c0_i32_0 = arith.constant 0 : i32
    %c0_i32_1 = arith.constant 0 : i32
    return %c0_i32, %c0_i32_0 : i32, i32
  }
  func.func @transform_7(%arg0: i32) -> (i32, i32) {
    %c0_i32 = arith.constant 0 : i32
    %c0_i32_0 = arith.constant 0 : i32
    return %arg0, %c0_i32 : i32, i32
  }
}

module attributes {stable_mosaic.version = 11 : i64} {
  func.func @_dummy_block_kernel(%arg0: i32, %arg1: memref<16x128xbf16, #tpu.memory_space<vmem>>, %arg2: memref<128x128xbf16, #tpu.memory_space<vmem>>, %arg3: memref<128x128xbf16, #tpu.memory_space<vmem>>, %arg4: memref<128x128xbf16, #tpu.memory_space<vmem>>, %arg5: memref<128x128xbf16, #tpu.memory_space<vmem>>, %arg6: memref<2x128xf32, #tpu.memory_space<vmem>>, %arg7: memref<2x128xf32, #tpu.memory_space<vmem>>, %arg8: memref<16x128xf32, #tpu.memory_space<vmem>>) attributes {dimension_semantics = [#tpu.dimension_semantics<parallel>], iteration_bounds = array<i64: 1>, scalar_prefetch = 0 : i64, scratch_operands = 0 : i64, tpu.core_type = #tpu.core_type<tc>, window_params = [{transform_indices = @transform_0, window_bounds = array<i64: 16, 128>}, {pipeline_mode = #tpu.pipeline_mode<synchronous>, transform_indices = @transform_1, window_bounds = array<i64: 128, 128>}, {pipeline_mode = #tpu.pipeline_mode<synchronous>, transform_indices = @transform_2, window_bounds = array<i64: 128, 128>}, {pipeline_mode = #tpu.pipeline_mode<synchronous>, transform_indices = @transform_3, window_bounds = array<i64: 128, 128>}, {pipeline_mode = #tpu.pipeline_mode<synchronous>, transform_indices = @transform_4, window_bounds = array<i64: 128, 128>}, {pipeline_mode = #tpu.pipeline_mode<synchronous>, transform_indices = @transform_5, window_bounds = array<i64: 2, 128>}, {pipeline_mode = #tpu.pipeline_mode<synchronous>, transform_indices = @transform_6, window_bounds = array<i64: 2, 128>}, {transform_indices = @transform_7, window_bounds = array<i64: 16, 128>}]} {
    %c0 = arith.constant 0 : index
    %c0_0 = arith.constant 0 : index
    %0 = vector.load %arg1[%c0, %c0_0] : memref<16x128xbf16, #tpu.memory_space<vmem>>, vector<16x128xbf16>
    %c0_1 = arith.constant 0 : index
    %c0_2 = arith.constant 0 : index
    %1 = vector.load %arg2[%c0_1, %c0_2] : memref<128x128xbf16, #tpu.memory_space<vmem>>, vector<128x128xbf16>
    %cst = arith.constant dense<0.000000e+00> : vector<16x128xf32>
    %2 = tpu.matmul %0, %1, %cst {dimension_numbers = #tpu.dot_dimension_numbers<[1], [0], [0], [1], [0, 0, 1, 1], [], []>} : vector<16x128xbf16>, vector<128x128xbf16>, vector<16x128xf32> -> vector<16x128xf32>
    %c0_3 = arith.constant 0 : index
    %c0_4 = arith.constant 0 : index
    %3 = vector.load %arg6[%c0_3, %c0_4] : memref<2x128xf32, #tpu.memory_space<vmem>>, vector<1x128xf32>
    %4 = vector.broadcast %3 : vector<1x128xf32> to vector<16x128xf32>
    %5 = arith.addf %2, %4 : vector<16x128xf32>
    %6 = arith.truncf %5 : vector<16x128xf32> to vector<16x128xbf16>
    %c0_5 = arith.constant 0 : index
    %c0_6 = arith.constant 0 : index
    %7 = vector.load %arg3[%c0_5, %c0_6] : memref<128x128xbf16, #tpu.memory_space<vmem>>, vector<128x128xbf16>
    %cst_7 = arith.constant dense<0.000000e+00> : vector<16x128xf32>
    %8 = tpu.matmul %6, %7, %cst_7 {dimension_numbers = #tpu.dot_dimension_numbers<[1], [0], [0], [1], [0, 0, 1, 1], [], []>} : vector<16x128xbf16>, vector<128x128xbf16>, vector<16x128xf32> -> vector<16x128xf32>
    %c0_8 = arith.constant 0 : index
    %c0_9 = arith.constant 0 : index
    %9 = vector.load %arg7[%c0_8, %c0_9] : memref<2x128xf32, #tpu.memory_space<vmem>>, vector<1x128xf32>
    %10 = vector.broadcast %9 : vector<1x128xf32> to vector<16x128xf32>
    %11 = arith.addf %8, %10 : vector<16x128xf32>
    %12 = arith.truncf %11 : vector<16x128xf32> to vector<16x128xbf16>
    %c0_10 = arith.constant 0 : index
    %c0_11 = arith.constant 0 : index
    %13 = vector.load %arg4[%c0_10, %c0_11] : memref<128x128xbf16, #tpu.memory_space<vmem>>, vector<128x128xbf16>
    %cst_12 = arith.constant dense<0.000000e+00> : vector<16x128xf32>
    %14 = tpu.matmul %12, %13, %cst_12 {dimension_numbers = #tpu.dot_dimension_numbers<[1], [0], [0], [1], [0, 0, 1, 1], [], []>} : vector<16x128xbf16>, vector<128x128xbf16>, vector<16x128xf32> -> vector<16x128xf32>
    %c1 = arith.constant 1 : index
    %c0_13 = arith.constant 0 : index
    %15 = vector.load %arg6[%c1, %c0_13] : memref<2x128xf32, #tpu.memory_space<vmem>>, vector<1x128xf32>
    %16 = vector.broadcast %15 : vector<1x128xf32> to vector<16x128xf32>
    %17 = arith.addf %14, %16 : vector<16x128xf32>
    %18 = arith.truncf %17 : vector<16x128xf32> to vector<16x128xbf16>
    %c0_14 = arith.constant 0 : index
    %c0_15 = arith.constant 0 : index
    %19 = vector.load %arg5[%c0_14, %c0_15] : memref<128x128xbf16, #tpu.memory_space<vmem>>, vector<128x128xbf16>
    %cst_16 = arith.constant dense<0.000000e+00> : vector<16x128xf32>
    %20 = tpu.matmul %18, %19, %cst_16 {dimension_numbers = #tpu.dot_dimension_numbers<[1], [0], [0], [1], [0, 0, 1, 1], [], []>} : vector<16x128xbf16>, vector<128x128xbf16>, vector<16x128xf32> -> vector<16x128xf32>
    %c1_17 = arith.constant 1 : index
    %c0_18 = arith.constant 0 : index
    %21 = vector.load %arg7[%c1_17, %c0_18] : memref<2x128xf32, #tpu.memory_space<vmem>>, vector<1x128xf32>
    %22 = vector.broadcast %21 : vector<1x128xf32> to vector<16x128xf32>
    %23 = arith.addf %20, %22 : vector<16x128xf32>
    %c0_19 = arith.constant 0 : index
    %c0_20 = arith.constant 0 : index
    %24 = vector.load %arg8[%c0_19, %c0_20] : memref<16x128xf32, #tpu.memory_space<vmem>>, vector<16x128xf32>
    tpu.vector_store %arg8[%c0_19, %c0_20], %23 {strides = array<i32>} : memref<16x128xf32, #tpu.memory_space<vmem>>, vector<16x128xf32>,
    return
  }
  func.func @transform_0(%arg0: i32) -> (i32, i32) {
    %c0_i32 = arith.constant 0 : i32
    %c0_i32_0 = arith.constant 0 : i32
    return %arg0, %c0_i32 : i32, i32
  }
  func.func @transform_1(%arg0: i32) -> (i32, i32) {
    %c0_i32 = arith.constant 0 : i32
    %c0_i32_0 = arith.constant 0 : i32
    %c0_i32_1 = arith.constant 0 : i32
    return %c0_i32, %c0_i32_0 : i32, i32
  }
  func.func @transform_2(%arg0: i32) -> (i32, i32) {
    %c0_i32 = arith.constant 0 : i32
    %c0_i32_0 = arith.constant 0 : i32
    %c0_i32_1 = arith.constant 0 : i32
    return %c0_i32, %c0_i32_0 : i32, i32
  }
  func.func @transform_3(%arg0: i32) -> (i32, i32) {
    %c0_i32 = arith.constant 0 : i32
    %c0_i32_0 = arith.constant 0 : i32
    %c0_i32_1 = arith.constant 0 : i32
    return %c0_i32, %c0_i32_0 : i32, i32
  }
  func.func @transform_4(%arg0: i32) -> (i32, i32) {
    %c0_i32 = arith.constant 0 : i32
    %c0_i32_0 = arith.constant 0 : i32
    %c0_i32_1 = arith.constant 0 : i32
    return %c0_i32, %c0_i32_0 : i32, i32
  }
  func.func @transform_5(%arg0: i32) -> (i32, i32) {
    %c0_i32 = arith.constant 0 : i32
    %c0_i32_0 = arith.constant 0 : i32
    %c0_i32_1 = arith.constant 0 : i32
    return %c0_i32, %c0_i32_0 : i32, i32
  }
  func.func @transform_6(%arg0: i32) -> (i32, i32) {
    %c0_i32 = arith.constant 0 : i32
    %c0_i32_0 = arith.constant 0 : i32
    %c0_i32_1 = arith.constant 0 : i32
    return %c0_i32, %c0_i32_0 : i32, i32
  }
  func.func @transform_7(%arg0: i32) -> (i32, i32) {
    %c0_i32 = arith.constant 0 : i32
    %c0_i32_0 = arith.constant 0 : i32
    return %arg0, %c0_i32 : i32, i32
  }
}

</mosaic_0001>

<llo_original>
// kernel: _forward_pallas.1
$region0: #{_forward_pallas.1}
  #allocation0 [shape = 'u32[]', space=smem, size = 0x4, offset = 0x4, fixed_abs, tag = 'smem constant byte address 0x4 - core index']
  #allocation1 [shape = 'u32[144,128]{1,0:T(1,128)}', space=vmem, size = 0x12000, scoped, tag = 'internal scratch']
  %s0 = inlined_call_operand.vmem [shape: bf16[16,128], index: 0, kind: input, shape index: {}]
  %s1 = inlined_call_operand.hbm [shape: bf16[128,128], index: 1, kind: input, shape index: {}]
  %s2 = inlined_call_operand.hbm [shape: bf16[128,128], index: 2, kind: input, shape index: {}]
  %s3 = inlined_call_operand.hbm [shape: bf16[128,128], index: 3, kind: input, shape index: {}]
  %s4 = inlined_call_operand.hbm [shape: bf16[128,128], index: 4, kind: input, shape index: {}]
  %s5 = inlined_call_operand.vmem [shape: f32[2,128], index: 5, kind: input, shape index: {}]
  %s6 = inlined_call_operand.vmem [shape: f32[2,128], index: 6, kind: input, shape index: {}]
  %s7 = inlined_call_operand.vmem [shape: f32[16,128], index: 7, kind: output, shape index: {}]
  %s8 = sld [smem:[#allocation0]]
  $region54: #{_forward_pallas.1} parent=0
    _
  %s10 = ssub.s32 1, %s8
  %s11 = scalar_select 0, %s10, %s8
  $region1: #{_forward_pallas.1} parent=0
    #allocation2 [shape = 'u8[32768]{0}', space=vmem, size = 0x8000, scoped, tag = 'input window, operand 1, single buffered']
    #allocation3 [shape = 's32[1]{0}', space=sflag, size = 0x4, scoped, tag = 'scoped memory for _forward_pallas.1']
    #allocation4 [shape = 'u8[32768]{0}', space=vmem, size = 0x8000, scoped, tag = 'input window, operand 2, single buffered']
    #allocation5 [shape = 's32[1]{0}', space=sflag, size = 0x4, scoped, tag = 'scoped memory for _forward_pallas.1']
    #allocation6 [shape = 'u8[32768]{0}', space=vmem, size = 0x8000, scoped, tag = 'input window, operand 3, single buffered']
    #allocation7 [shape = 'u8[32768]{0}', space=vmem, size = 0x8000, scoped, tag = 'input window, operand 4, single buffered']
    #allocation8 [shape = 's32[1]{0}', space=sflag, size = 0x4, scoped, tag = 'scoped memory for _forward_pallas.1']
    %12 = vsyncpa [#allocation3], 0
    %13 = vsyncpa [#allocation5], 0
    %14 = vsyncpa [#allocation8], 0
    // Predicated region
    $region2: #{_forward_pallas.1} parent=1 // pred_check
      _
    $region3: #{_forward_pallas.1} parent=1 // pred_check_branch
      %16 = sbr.rel (0) target = $region5
    $region4: #{_forward_pallas.1} parent=1 // pred_region
      _
    $region5: #{_forward_pallas.1} parent=1 // pred_fallthru
      _
    // Predicated region
    $region6: #{_forward_pallas.1} parent=1 // pred_check
      _
    $region7: #{_forward_pallas.1} parent=1 // pred_check_branch
      %18 = sbr.rel (0) target = $region9
    $region8: #{_forward_pallas.1} parent=1 // pred_region
      %s20 = ssub.s32 1024, 1024
      %21 = vsyncadd [#allocation3], %s20
      %s22 = sshll.u32 [#allocation2], 4
      %s23 = int_to_ptr.vmem [resolvable:$true] %s22
      %28 = dma.hbm_to_vmem [thread:$0]  %s1, 1024, %s23, [#allocation3], 64, 64, 4
    $region9: #{_forward_pallas.1} parent=1 // pred_fallthru
      _
    // Predicated region
    $region10: #{_forward_pallas.1} parent=1 // pred_check
      _
    $region11: #{_forward_pallas.1} parent=1 // pred_check_branch
      %30 = sbr.rel (0) target = $region13
    $region12: #{_forward_pallas.1} parent=1 // pred_region
      %s32 = ssub.s32 1024, 1024
      %33 = vsyncadd [#allocation5], %s32
      %s34 = sshll.u32 [#allocation4], 4
      %s35 = int_to_ptr.vmem [resolvable:$true] %s34
      %40 = dma.hbm_to_vmem [thread:$0]  %s2, 1024, %s35, [#allocation5], 64, 64, 4
    $region13: #{_forward_pallas.1} parent=1 // pred_fallthru
      _
    // Predicated region
    $region14: #{_forward_pallas.1} parent=1 // pred_check
      _
    $region15: #{_forward_pallas.1} parent=1 // pred_check_branch
      %42 = sbr.rel (0) target = $region17
    $region16: #{_forward_pallas.1} parent=1 // pred_region
      %s44 = ssub.s32 1024, 1024
      %45 = vsyncadd [#allocation5], %s44
      %s46 = sshll.u32 [#allocation6], 4
      %s47 = int_to_ptr.vmem [resolvable:$true] %s46
      %52 = dma.hbm_to_vmem [thread:$0]  %s3, 1024, %s47, [#allocation5], 64, 64, 4
    $region17: #{_forward_pallas.1} parent=1 // pred_fallthru
      _
    // Predicated region
    $region18: #{_forward_pallas.1} parent=1 // pred_check
      _
    $region19: #{_forward_pallas.1} parent=1 // pred_check_branch
      %54 = sbr.rel (0) target = $region21
    $region20: #{_forward_pallas.1} parent=1 // pred_region
      %s56 = ssub.s32 1024, 1024
      %57 = vsyncadd [#allocation8], %s56
      %s58 = sshll.u32 [#allocation7], 4
      %s59 = int_to_ptr.vmem [resolvable:$true] %s58
      %64 = dma.hbm_to_vmem [thread:$0]  %s4, 1024, %s59, [#allocation8], 64, 64, 4
    $region21: #{_forward_pallas.1} parent=1 // pred_fallthru
      _
    // Predicated region
    $region22: #{_forward_pallas.1} parent=1 // pred_check
      _
    $region23: #{_forward_pallas.1} parent=1 // pred_check_branch
      %66 = sbr.rel (0) target = $region25
    $region24: #{_forward_pallas.1} parent=1 // pred_region
      _
    $region25: #{_forward_pallas.1} parent=1 // pred_fallthru
      _
    // Predicated region
    $region26: #{_forward_pallas.1} parent=1 // pred_check
      _
    $region27: #{_forward_pallas.1} parent=1 // pred_check_branch
      %68 = sbr.rel (0) target = $region29
    $region28: #{_forward_pallas.1} parent=1 // pred_region
      _
    $region29: #{_forward_pallas.1} parent=1 // pred_fallthru
      _
    // Predicated region
    $region30: #{_forward_pallas.1} parent=1 // pred_check
      _
    $region31: #{_forward_pallas.1} parent=1 // pred_check_branch
      %70 = sbr.rel (0) target = $region33
    $region32: #{_forward_pallas.1} parent=1 // pred_region
      %71 = dma.done [#allocation3], 1024
    $region33: #{_forward_pallas.1} parent=1 // pred_fallthru
      _
    // Predicated region
    $region34: #{_forward_pallas.1} parent=1 // pred_check
      _
    $region35: #{_forward_pallas.1} parent=1 // pred_check_branch
      %73 = sbr.rel (0) target = $region37
    $region36: #{_forward_pallas.1} parent=1 // pred_region
      %74 = dma.done [#allocation5], 1024
    $region37: #{_forward_pallas.1} parent=1 // pred_fallthru
      _
    // Predicated region
    $region38: #{_forward_pallas.1} parent=1 // pred_check
      _
    $region39: #{_forward_pallas.1} parent=1 // pred_check_branch
      %76 = sbr.rel (0) target = $region41
    $region40: #{_forward_pallas.1} parent=1 // pred_region
      %77 = dma.done [#allocation5], 1024
    $region41: #{_forward_pallas.1} parent=1 // pred_fallthru
      _
    // Predicated region
    $region42: #{_forward_pallas.1} parent=1 // pred_check
      _
    $region43: #{_forward_pallas.1} parent=1 // pred_check_branch
      %79 = sbr.rel (0) target = $region45
    $region44: #{_forward_pallas.1} parent=1 // pred_region
      %80 = dma.done [#allocation8], 1024
    $region45: #{_forward_pallas.1} parent=1 // pred_fallthru
      _
    %v82 = vld [vmem:[%s0] sm:$0xf]
    %v83 = vld [vmem:[%s0 + $0x4] sm:$0xf]
    %v84 = vld [vmem:[#allocation2] sm:$0xf]
    %v85 = vld [vmem:[#allocation2 + $0x4] sm:$0xf]
    %v86 = vld [vmem:[#allocation2 + $0x8] sm:$0xf]
    %v87 = vld [vmem:[#allocation2 + $0xc] sm:$0xf]
    %v88 = vld [vmem:[#allocation2 + $0x10] sm:$0xf]
    %v89 = vld [vmem:[#allocation2 + $0x14] sm:$0xf]
    %v90 = vld [vmem:[#allocation2 + $0x18] sm:$0xf]
    %v91 = vld [vmem:[#allocation2 + $0x1c] sm:$0xf]
    %v92 = vld [vmem:[#allocation2 + $0x20] sm:$0xf]
    %v93 = vld [vmem:[#allocation2 + $0x24] sm:$0xf]
    %v94 = vld [vmem:[#allocation2 + $0x28] sm:$0xf]
    %v95 = vld [vmem:[#allocation2 + $0x2c] sm:$0xf]
    %v96 = vld [vmem:[#allocation2 + $0x30] sm:$0xf]
    %v97 = vld [vmem:[#allocation2 + $0x34] sm:$0xf]
    %v98 = vld [vmem:[#allocation2 + $0x38] sm:$0xf]
    %v99 = vld [vmem:[#allocation2 + $0x3c] sm:$0xf]
    %v100 = vld [vmem:[%s5] sm:$0x1]
    %v101 = vlaneseq
    %v102 = vshrl.u32 %v101, 7
    %v103 = vsub.s32 0, %v102
    %v104 = vrot.slane %v100, %v103
    %v107 = vunpack.c.l.b16 %v82
    %v108 = vunpack.c.l.b16 %v83
    %v109 = vpack.c.b16 %v108, %v107
    %v127 = vunpack.c.l.b16 %v84
    %v128 = vunpack.c.l.b16 %v85
    %v129 = vunpack.c.l.b16 %v86
    %v130 = vunpack.c.l.b16 %v87
    %v131 = vunpack.c.l.b16 %v88
    %v132 = vunpack.c.l.b16 %v89
    %v133 = vunpack.c.l.b16 %v90
    %v134 = vunpack.c.l.b16 %v91
    %v135 = vunpack.c.l.b16 %v92
    %v136 = vunpack.c.l.b16 %v93
    %v137 = vunpack.c.l.b16 %v94
    %v138 = vunpack.c.l.b16 %v95
    %v139 = vunpack.c.l.b16 %v96
    %v140 = vunpack.c.l.b16 %v97
    %v141 = vunpack.c.l.b16 %v98
    %v142 = vunpack.c.l.b16 %v99
    %v143 = vpack.c.b16 %v128, %v127
    %v144 = vpack.c.b16 %v130, %v129
    %v145 = vpack.c.b16 %v132, %v131
    %v146 = vpack.c.b16 %v134, %v133
    %v147 = vpack.c.b16 %v136, %v135
    %v148 = vpack.c.b16 %v138, %v137
    %v149 = vpack.c.b16 %v140, %v139
    %v150 = vpack.c.b16 %v142, %v141
    %159 = vmatprep.subr.bf16.mxu0 0
    %160 = vmatpush1.bf16.msra.mxu0 %v143
    %161 = vmatprep.subr.bf16.mxu0 0
    %162 = vmatpush1.bf16.msra.mxu0 %v144
    %163 = vmatprep.subr.bf16.mxu0 0
    %164 = vmatpush1.bf16.msra.mxu0 %v145
    %165 = vmatprep.subr.bf16.mxu0 0
    %166 = vmatpush1.bf16.msra.mxu0 %v146
    %167 = vmatprep.subr.bf16.mxu0 0
    %168 = vmatpush1.bf16.msra.mxu0 %v147
    %169 = vmatprep.subr.bf16.mxu0 0
    %170 = vmatpush1.bf16.msra.mxu0 %v148
    %171 = vmatprep.subr.bf16.mxu0 0
    %172 = vmatpush1.bf16.msra.mxu0 %v149
    %173 = vmatprep.subr.bf16.mxu0 0
    %174 = vmatpush1.bf16.msra.mxu0 %v150
    %175 = vmatprep.subr.bf16.mxu0 0
    %176 = vmatpush1.bf16.msra.mxu0 0
    %177 = vmatprep.subr.bf16.mxu0 0
    %178 = vmatpush1.bf16.msra.mxu0 0
    %179 = vmatprep.subr.bf16.mxu0 0
    %180 = vmatpush1.bf16.msra.mxu0 0
    %181 = vmatprep.subr.bf16.mxu0 0
    %182 = vmatpush1.bf16.msra.mxu0 0
    %183 = vmatprep.subr.bf16.mxu0 0
    %184 = vmatpush1.bf16.msra.mxu0 0
    %185 = vmatprep.subr.bf16.mxu0 0
    %186 = vmatpush1.bf16.msra.mxu0 0
    %187 = vmatprep.subr.bf16.mxu0 0
    %188 = vmatpush1.bf16.msra.mxu0 0
    %189 = vmatprep.subr.bf16.mxu0 0
    %190 = vmatpush1.bf16.msra.mxu0 0
    %191 = vmatprep.mubr.bf16.mxu0 0
    %192 = vmatmul.mubr.bf16.gmra.mrb[0].mxu0 %v109
    %v193 = vpop.f32.mrb[0].mxu0
    %v194 = vadd.f32 %v104, %v193
    %v195 = vpop.f32.mrb[0].mxu0
    %v196 = vpop.f32.mrb[0].mxu0
    %v197 = vadd.f32 %v104, %v196
    %v198 = vpop.f32.mrb[0].mxu0
    %199 = vdwg.mxu0
    %v200 = vpack.c.bf16 %v197, %v194
    %v201 = vld [vmem:[#allocation4] sm:$0xf]
    %v202 = vld [vmem:[#allocation4 + $0x4] sm:$0xf]
    %v203 = vld [vmem:[#allocation4 + $0x8] sm:$0xf]
    %v204 = vld [vmem:[#allocation4 + $0xc] sm:$0xf]
    %v205 = vld [vmem:[#allocation4 + $0x10] sm:$0xf]
    %v206 = vld [vmem:[#allocation4 + $0x14] sm:$0xf]
    %v207 = vld [vmem:[#allocation4 + $0x18] sm:$0xf]
    %v208 = vld [vmem:[#allocation4 + $0x1c] sm:$0xf]
    %v209 = vld [vmem:[#allocation4 + $0x20] sm:$0xf]
    %v210 = vld [vmem:[#allocation4 + $0x24] sm:$0xf]
    %v211 = vld [vmem:[#allocation4 + $0x28] sm:$0xf]
    %v212 = vld [vmem:[#allocation4 + $0x2c] sm:$0xf]
    %v213 = vld [vmem:[#allocation4 + $0x30] sm:$0xf]
    %v214 = vld [vmem:[#allocation4 + $0x34] sm:$0xf]
    %v215 = vld [vmem:[#allocation4 + $0x38] sm:$0xf]
    %v216 = vld [vmem:[#allocation4 + $0x3c] sm:$0xf]
    %v217 = vld [vmem:[%s6] sm:$0x1]
    %v218 = vlaneseq
    %v219 = vshrl.u32 %v218, 7
    %v220 = vsub.s32 0, %v219
    %v221 = vrot.slane %v217, %v220
    %v238 = vunpack.c.l.b16 %v201
    %v239 = vunpack.c.l.b16 %v202
    %v240 = vunpack.c.l.b16 %v203
    %v241 = vunpack.c.l.b16 %v204
    %v242 = vunpack.c.l.b16 %v205
    %v243 = vunpack.c.l.b16 %v206
    %v244 = vunpack.c.l.b16 %v207
    %v245 = vunpack.c.l.b16 %v208
    %v246 = vunpack.c.l.b16 %v209
    %v247 = vunpack.c.l.b16 %v210
    %v248 = vunpack.c.l.b16 %v211
    %v249 = vunpack.c.l.b16 %v212
    %v250 = vunpack.c.l.b16 %v213
    %v251 = vunpack.c.l.b16 %v214
    %v252 = vunpack.c.l.b16 %v215
    %v253 = vunpack.c.l.b16 %v216
    %v254 = vpack.c.b16 %v239, %v238
    %v255 = vpack.c.b16 %v241, %v240
    %v256 = vpack.c.b16 %v243, %v242
    %v257 = vpack.c.b16 %v245, %v244
    %v258 = vpack.c.b16 %v247, %v246
    %v259 = vpack.c.b16 %v249, %v248
    %v260 = vpack.c.b16 %v251, %v250
    %v261 = vpack.c.b16 %v253, %v252
    %270 = vmatprep.subr.bf16.mxu0 0
    %271 = vmatpush1.bf16.msra.mxu0 %v254
    %272 = vmatprep.subr.bf16.mxu0 0
    %273 = vmatpush1.bf16.msra.mxu0 %v255
    %274 = vmatprep.subr.bf16.mxu0 0
    %275 = vmatpush1.bf16.msra.mxu0 %v256
    %276 = vmatprep.subr.bf16.mxu0 0
    %277 = vmatpush1.bf16.msra.mxu0 %v257
    %278 = vmatprep.subr.bf16.mxu0 0
    %279 = vmatpush1.bf16.msra.mxu0 %v258
    %280 = vmatprep.subr.bf16.mxu0 0
    %281 = vmatpush1.bf16.msra.mxu0 %v259
    %282 = vmatprep.subr.bf16.mxu0 0
    %283 = vmatpush1.bf16.msra.mxu0 %v260
    %284 = vmatprep.subr.bf16.mxu0 0
    %285 = vmatpush1.bf16.msra.mxu0 %v261
    %286 = vmatprep.subr.bf16.mxu0 0
    %287 = vmatpush1.bf16.msra.mxu0 0
    %288 = vmatprep.subr.bf16.mxu0 0
    %289 = vmatpush1.bf16.msra.mxu0 0
    %290 = vmatprep.subr.bf16.mxu0 0
    %291 = vmatpush1.bf16.msra.mxu0 0
    %292 = vmatprep.subr.bf16.mxu0 0
    %293 = vmatpush1.bf16.msra.mxu0 0
    %294 = vmatprep.subr.bf16.mxu0 0
    %295 = vmatpush1.bf16.msra.mxu0 0
    %296 = vmatprep.subr.bf16.mxu0 0
    %297 = vmatpush1.bf16.msra.mxu0 0
    %298 = vmatprep.subr.bf16.mxu0 0
    %299 = vmatpush1.bf16.msra.mxu0 0
    %300 = vmatprep.subr.bf16.mxu0 0
    %301 = vmatpush1.bf16.msra.mxu0 0
    %302 = vmatprep.mubr.bf16.mxu0 0
    %303 = vmatmul.mubr.bf16.gmra.mrb[0].mxu0 %v200
    %v304 = vpop.f32.mrb[0].mxu0
    %v305 = vadd.f32 %v221, %v304
    %v306 = vpop.f32.mrb[0].mxu0
    %v307 = vpop.f32.mrb[0].mxu0
    %v308 = vadd.f32 %v221, %v307
    %v309 = vpop.f32.mrb[0].mxu0
    %310 = vdwg.mxu0
    %v311 = vpack.c.bf16 %v308, %v305
    %v312 = vld [vmem:[#allocation6] sm:$0xf]
    %v313 = vld [vmem:[#allocation6 + $0x4] sm:$0xf]
    %v314 = vld [vmem:[#allocation6 + $0x8] sm:$0xf]
    %v315 = vld [vmem:[#allocation6 + $0xc] sm:$0xf]
    %v316 = vld [vmem:[#allocation6 + $0x10] sm:$0xf]
    %v317 = vld [vmem:[#allocation6 + $0x14] sm:$0xf]
    %v318 = vld [vmem:[#allocation6 + $0x18] sm:$0xf]
    %v319 = vld [vmem:[#allocation6 + $0x1c] sm:$0xf]
    %v320 = vld [vmem:[#allocation6 + $0x20] sm:$0xf]
    %v321 = vld [vmem:[#allocation6 + $0x24] sm:$0xf]
    %v322 = vld [vmem:[#allocation6 + $0x28] sm:$0xf]
    %v323 = vld [vmem:[#allocation6 + $0x2c] sm:$0xf]
    %v324 = vld [vmem:[#allocation6 + $0x30] sm:$0xf]
    %v325 = vld [vmem:[#allocation6 + $0x34] sm:$0xf]
    %v326 = vld [vmem:[#allocation6 + $0x38] sm:$0xf]
    %v327 = vld [vmem:[#allocation6 + $0x3c] sm:$0xf]
    %v328 = vld [vmem:[%s5 + $0x1] sm:$0x1]
    %v329 = vlaneseq
    %v330 = vshrl.u32 %v329, 7
    %v331 = vsub.s32 0, %v330
    %v332 = vrot.slane %v328, %v331
    %v349 = vunpack.c.l.b16 %v312
    %v350 = vunpack.c.l.b16 %v313
    %v351 = vunpack.c.l.b16 %v314
    %v352 = vunpack.c.l.b16 %v315
    %v353 = vunpack.c.l.b16 %v316
    %v354 = vunpack.c.l.b16 %v317
    %v355 = vunpack.c.l.b16 %v318
    %v356 = vunpack.c.l.b16 %v319
    %v357 = vunpack.c.l.b16 %v320
    %v358 = vunpack.c.l.b16 %v321
    %v359 = vunpack.c.l.b16 %v322
    %v360 = vunpack.c.l.b16 %v323
    %v361 = vunpack.c.l.b16 %v324
    %v362 = vunpack.c.l.b16 %v325
    %v363 = vunpack.c.l.b16 %v326
    %v364 = vunpack.c.l.b16 %v327
    %v365 = vpack.c.b16 %v350, %v349
    %v366 = vpack.c.b16 %v352, %v351
    %v367 = vpack.c.b16 %v354, %v353
    %v368 = vpack.c.b16 %v356, %v355
    %v369 = vpack.c.b16 %v358, %v357
    %v370 = vpack.c.b16 %v360, %v359
    %v371 = vpack.c.b16 %v362, %v361
    %v372 = vpack.c.b16 %v364, %v363
    %381 = vmatprep.subr.bf16.mxu0 0
    %382 = vmatpush1.bf16.msra.mxu0 %v365
    %383 = vmatprep.subr.bf16.mxu0 0
    %384 = vmatpush1.bf16.msra.mxu0 %v366
    %385 = vmatprep.subr.bf16.mxu0 0
    %386 = vmatpush1.bf16.msra.mxu0 %v367
    %387 = vmatprep.subr.bf16.mxu0 0
    %388 = vmatpush1.bf16.msra.mxu0 %v368
    %389 = vmatprep.subr.bf16.mxu0 0
    %390 = vmatpush1.bf16.msra.mxu0 %v369
    %391 = vmatprep.subr.bf16.mxu0 0
    %392 = vmatpush1.bf16.msra.mxu0 %v370
    %393 = vmatprep.subr.bf16.mxu0 0
    %394 = vmatpush1.bf16.msra.mxu0 %v371
    %395 = vmatprep.subr.bf16.mxu0 0
    %396 = vmatpush1.bf16.msra.mxu0 %v372
    %397 = vmatprep.subr.bf16.mxu0 0
    %398 = vmatpush1.bf16.msra.mxu0 0
    %399 = vmatprep.subr.bf16.mxu0 0
    %400 = vmatpush1.bf16.msra.mxu0 0
    %401 = vmatprep.subr.bf16.mxu0 0
    %402 = vmatpush1.bf16.msra.mxu0 0
    %403 = vmatprep.subr.bf16.mxu0 0
    %404 = vmatpush1.bf16.msra.mxu0 0
    %405 = vmatprep.subr.bf16.mxu0 0
    %406 = vmatpush1.bf16.msra.mxu0 0
    %407 = vmatprep.subr.bf16.mxu0 0
    %408 = vmatpush1.bf16.msra.mxu0 0
    %409 = vmatprep.subr.bf16.mxu0 0
    %410 = vmatpush1.bf16.msra.mxu0 0
    %411 = vmatprep.subr.bf16.mxu0 0
    %412 = vmatpush1.bf16.msra.mxu0 0
    %413 = vmatprep.mubr.bf16.mxu0 0
    %414 = vmatmul.mubr.bf16.gmra.mrb[0].mxu0 %v311
    %v415 = vpop.f32.mrb[0].mxu0
    %v416 = vadd.f32 %v332, %v415
    %v417 = vpop.f32.mrb[0].mxu0
    %v418 = vpop.f32.mrb[0].mxu0
    %v419 = vadd.f32 %v332, %v418
    %v420 = vpop.f32.mrb[0].mxu0
    %421 = vdwg.mxu0
    %v422 = vpack.c.bf16 %v419, %v416
    %v423 = vld [vmem:[#allocation7] sm:$0xf]
    %v424 = vld [vmem:[#allocation7 + $0x4] sm:$0xf]
    %v425 = vld [vmem:[#allocation7 + $0x8] sm:$0xf]
    %v426 = vld [vmem:[#allocation7 + $0xc] sm:$0xf]
    %v427 = vld [vmem:[#allocation7 + $0x10] sm:$0xf]
    %v428 = vld [vmem:[#allocation7 + $0x14] sm:$0xf]
    %v429 = vld [vmem:[#allocation7 + $0x18] sm:$0xf]
    %v430 = vld [vmem:[#allocation7 + $0x1c] sm:$0xf]
    %v431 = vld [vmem:[#allocation7 + $0x20] sm:$0xf]
    %v432 = vld [vmem:[#allocation7 + $0x24] sm:$0xf]
    %v433 = vld [vmem:[#allocation7 + $0x28] sm:$0xf]
    %v434 = vld [vmem:[#allocation7 + $0x2c] sm:$0xf]
    %v435 = vld [vmem:[#allocation7 + $0x30] sm:$0xf]
    %v436 = vld [vmem:[#allocation7 + $0x34] sm:$0xf]
    %v437 = vld [vmem:[#allocation7 + $0x38] sm:$0xf]
    %v438 = vld [vmem:[#allocation7 + $0x3c] sm:$0xf]
    %v439 = vld [vmem:[%s6 + $0x1] sm:$0x1]
    %v440 = vlaneseq
    %v441 = vshrl.u32 %v440, 7
    %v442 = vsub.s32 0, %v441
    %v443 = vrot.slane %v439, %v442
    %v460 = vunpack.c.l.b16 %v423
    %v461 = vunpack.c.l.b16 %v424
    %v462 = vunpack.c.l.b16 %v425
    %v463 = vunpack.c.l.b16 %v426
    %v464 = vunpack.c.l.b16 %v427
    %v465 = vunpack.c.l.b16 %v428
    %v466 = vunpack.c.l.b16 %v429
    %v467 = vunpack.c.l.b16 %v430
    %v468 = vunpack.c.l.b16 %v431
    %v469 = vunpack.c.l.b16 %v432
    %v470 = vunpack.c.l.b16 %v433
    %v471 = vunpack.c.l.b16 %v434
    %v472 = vunpack.c.l.b16 %v435
    %v473 = vunpack.c.l.b16 %v436
    %v474 = vunpack.c.l.b16 %v437
    %v475 = vunpack.c.l.b16 %v438
    %v476 = vpack.c.b16 %v461, %v460
    %v477 = vpack.c.b16 %v463, %v462
    %v478 = vpack.c.b16 %v465, %v464
    %v479 = vpack.c.b16 %v467, %v466
    %v480 = vpack.c.b16 %v469, %v468
    %v481 = vpack.c.b16 %v471, %v470
    %v482 = vpack.c.b16 %v473, %v472
    %v483 = vpack.c.b16 %v475, %v474
    %492 = vmatprep.subr.bf16.mxu0 0
    %493 = vmatpush1.bf16.msra.mxu0 %v476
    %494 = vmatprep.subr.bf16.mxu0 0
    %495 = vmatpush1.bf16.msra.mxu0 %v477
    %496 = vmatprep.subr.bf16.mxu0 0
    %497 = vmatpush1.bf16.msra.mxu0 %v478
    %498 = vmatprep.subr.bf16.mxu0 0
    %499 = vmatpush1.bf16.msra.mxu0 %v479
    %500 = vmatprep.subr.bf16.mxu0 0
    %501 = vmatpush1.bf16.msra.mxu0 %v480
    %502 = vmatprep.subr.bf16.mxu0 0
    %503 = vmatpush1.bf16.msra.mxu0 %v481
    %504 = vmatprep.subr.bf16.mxu0 0
    %505 = vmatpush1.bf16.msra.mxu0 %v482
    %506 = vmatprep.subr.bf16.mxu0 0
    %507 = vmatpush1.bf16.msra.mxu0 %v483
    %508 = vmatprep.subr.bf16.mxu0 0
    %509 = vmatpush1.bf16.msra.mxu0 0
    %510 = vmatprep.subr.bf16.mxu0 0
    %511 = vmatpush1.bf16.msra.mxu0 0
    %512 = vmatprep.subr.bf16.mxu0 0
    %513 = vmatpush1.bf16.msra.mxu0 0
    %514 = vmatprep.subr.bf16.mxu0 0
    %515 = vmatpush1.bf16.msra.mxu0 0
    %516 = vmatprep.subr.bf16.mxu0 0
    %517 = vmatpush1.bf16.msra.mxu0 0
    %518 = vmatprep.subr.bf16.mxu0 0
    %519 = vmatpush1.bf16.msra.mxu0 0
    %520 = vmatprep.subr.bf16.mxu0 0
    %521 = vmatpush1.bf16.msra.mxu0 0
    %522 = vmatprep.subr.bf16.mxu0 0
    %523 = vmatpush1.bf16.msra.mxu0 0
    %524 = vmatprep.mubr.bf16.mxu0 0
    %525 = vmatmul.mubr.bf16.gmra.mrb[0].mxu0 %v422
    %v526 = vpop.f32.mrb[0].mxu0
    %v527 = vadd.f32 %v443, %v526
    %v528 = vpop.f32.mrb[0].mxu0
    %v529 = vpop.f32.mrb[0].mxu0
    %v530 = vadd.f32 %v443, %v529
    %v531 = vpop.f32.mrb[0].mxu0
    %532 = vdwg.mxu0
    %533 = vst [vmem:[%s7] sm:$0xff] %v527
    %534 = vst [vmem:[%s7 + $0x8] sm:$0xff] %v530
    // Predicated region
    $region46: #{_forward_pallas.1} parent=1 // pred_check
      _
    $region47: #{_forward_pallas.1} parent=1 // pred_check_branch
      %536 = sbr.rel (0) target = $region49
    $region48: #{_forward_pallas.1} parent=1 // pred_region
      _
    $region49: #{_forward_pallas.1} parent=1 // pred_fallthru
      _
    // Predicated region
    $region50: #{_forward_pallas.1} parent=1 // pred_check
      _
    $region51: #{_forward_pallas.1} parent=1 // pred_check_branch
      %538 = sbr.rel (0) target = $region53
    $region52: #{_forward_pallas.1} parent=1 // pred_region
      _
    $region53: #{_forward_pallas.1} parent=1 // pred_fallthru
      _
    %539 = vsyncpa [#allocation3], 1
    %540 = vsyncpa [#allocation5], 1
    %541 = vsyncpa [#allocation8], 1

// kernel: _forward_pallas.1
$region0: #{_forward_pallas.1}
  #allocation0 [shape = 'u32[]', space=smem, size = 0x4, offset = 0x4, fixed_abs, tag = 'smem constant byte address 0x4 - core index']
  #allocation1 [shape = 'u32[144,128]{1,0:T(1,128)}', space=vmem, size = 0x12000, scoped, tag = 'internal scratch']
  %s0 = inlined_call_operand.vmem [shape: bf16[16,128], index: 0, kind: input, shape index: {}]
  %s1 = inlined_call_operand.hbm [shape: bf16[128,128], index: 1, kind: input, shape index: {}]
  %s2 = inlined_call_operand.hbm [shape: bf16[128,128], index: 2, kind: input, shape index: {}]
  %s3 = inlined_call_operand.hbm [shape: bf16[128,128], index: 3, kind: input, shape index: {}]
  %s4 = inlined_call_operand.hbm [shape: bf16[128,128], index: 4, kind: input, shape index: {}]
  %s5 = inlined_call_operand.vmem [shape: f32[2,128], index: 5, kind: input, shape index: {}]
  %s6 = inlined_call_operand.vmem [shape: f32[2,128], index: 6, kind: input, shape index: {}]
  %s7 = inlined_call_operand.vmem [shape: f32[16,128], index: 7, kind: output, shape index: {}]
  %s8 = sld [smem:[#allocation0]]
  $region54: #{_forward_pallas.1} parent=0
    _
  %s10 = ssub.s32 1, %s8
  %s11 = scalar_select 0, %s10, %s8
  $region1: #{_forward_pallas.1} parent=0
    #allocation2 [shape = 'u8[32768]{0}', space=vmem, size = 0x8000, scoped, tag = 'input window, operand 1, single buffered']
    #allocation3 [shape = 's32[1]{0}', space=sflag, size = 0x4, scoped, tag = 'scoped memory for _forward_pallas.1']
    #allocation4 [shape = 'u8[32768]{0}', space=vmem, size = 0x8000, scoped, tag = 'input window, operand 2, single buffered']
    #allocation5 [shape = 's32[1]{0}', space=sflag, size = 0x4, scoped, tag = 'scoped memory for _forward_pallas.1']
    #allocation6 [shape = 'u8[32768]{0}', space=vmem, size = 0x8000, scoped, tag = 'input window, operand 3, single buffered']
    #allocation7 [shape = 'u8[32768]{0}', space=vmem, size = 0x8000, scoped, tag = 'input window, operand 4, single buffered']
    #allocation8 [shape = 's32[1]{0}', space=sflag, size = 0x4, scoped, tag = 'scoped memory for _forward_pallas.1']
    %12 = vsyncpa [#allocation3], 0
    %13 = vsyncpa [#allocation5], 0
    %14 = vsyncpa [#allocation8], 0
    // Predicated region
    $region2: #{_forward_pallas.1} parent=1 // pred_check
      _
    $region3: #{_forward_pallas.1} parent=1 // pred_check_branch
      %16 = sbr.rel (0) target = $region5
    $region4: #{_forward_pallas.1} parent=1 // pred_region
      _
    $region5: #{_forward_pallas.1} parent=1 // pred_fallthru
      _
    // Predicated region
    $region6: #{_forward_pallas.1} parent=1 // pred_check
      _
    $region7: #{_forward_pallas.1} parent=1 // pred_check_branch
      %18 = sbr.rel (0) target = $region9
    $region8: #{_forward_pallas.1} parent=1 // pred_region
      %s20 = ssub.s32 1024, 1024
      %21 = vsyncadd [#allocation3], %s20
      %s22 = sshll.u32 [#allocation2], 4
      %s23 = int_to_ptr.vmem [resolvable:$true] %s22
      %28 = dma.hbm_to_vmem [thread:$0]  %s1, 1024, %s23, [#allocation3], 64, 64, 4
    $region9: #{_forward_pallas.1} parent=1 // pred_fallthru
      _
    // Predicated region
    $region10: #{_forward_pallas.1} parent=1 // pred_check
      _
    $region11: #{_forward_pallas.1} parent=1 // pred_check_branch
      %30 = sbr.rel (0) target = $region13
    $region12: #{_forward_pallas.1} parent=1 // pred_region
      %s32 = ssub.s32 1024, 1024
      %33 = vsyncadd [#allocation5], %s32
      %s34 = sshll.u32 [#allocation4], 4
      %s35 = int_to_ptr.vmem [resolvable:$true] %s34
      %40 = dma.hbm_to_vmem [thread:$0]  %s2, 1024, %s35, [#allocation5], 64, 64, 4
    $region13: #{_forward_pallas.1} parent=1 // pred_fallthru
      _
    // Predicated region
    $region14: #{_forward_pallas.1} parent=1 // pred_check
      _
    $region15: #{_forward_pallas.1} parent=1 // pred_check_branch
      %42 = sbr.rel (0) target = $region17
    $region16: #{_forward_pallas.1} parent=1 // pred_region
      %s44 = ssub.s32 1024, 1024
      %45 = vsyncadd [#allocation5], %s44
      %s46 = sshll.u32 [#allocation6], 4
      %s47 = int_to_ptr.vmem [resolvable:$true] %s46
      %52 = dma.hbm_to_vmem [thread:$0]  %s3, 1024, %s47, [#allocation5], 64, 64, 4
    $region17: #{_forward_pallas.1} parent=1 // pred_fallthru
      _
    // Predicated region
    $region18: #{_forward_pallas.1} parent=1 // pred_check
      _
    $region19: #{_forward_pallas.1} parent=1 // pred_check_branch
      %54 = sbr.rel (0) target = $region21
    $region20: #{_forward_pallas.1} parent=1 // pred_region
      %s56 = ssub.s32 1024, 1024
      %57 = vsyncadd [#allocation8], %s56
      %s58 = sshll.u32 [#allocation7], 4
      %s59 = int_to_ptr.vmem [resolvable:$true] %s58
      %64 = dma.hbm_to_vmem [thread:$0]  %s4, 1024, %s59, [#allocation8], 64, 64, 4
    $region21: #{_forward_pallas.1} parent=1 // pred_fallthru
      _
    // Predicated region
    $region22: #{_forward_pallas.1} parent=1 // pred_check
      _
    $region23: #{_forward_pallas.1} parent=1 // pred_check_branch
      %66 = sbr.rel (0) target = $region25
    $region24: #{_forward_pallas.1} parent=1 // pred_region
      _
    $region25: #{_forward_pallas.1} parent=1 // pred_fallthru
      _
    // Predicated region
    $region26: #{_forward_pallas.1} parent=1 // pred_check
      _
    $region27: #{_forward_pallas.1} parent=1 // pred_check_branch
      %68 = sbr.rel (0) target = $region29
    $region28: #{_forward_pallas.1} parent=1 // pred_region
      _
    $region29: #{_forward_pallas.1} parent=1 // pred_fallthru
      _
    // Predicated region
    $region30: #{_forward_pallas.1} parent=1 // pred_check
      _
    $region31: #{_forward_pallas.1} parent=1 // pred_check_branch
      %70 = sbr.rel (0) target = $region33
    $region32: #{_forward_pallas.1} parent=1 // pred_region
      %71 = dma.done [#allocation3], 1024
    $region33: #{_forward_pallas.1} parent=1 // pred_fallthru
      _
    // Predicated region
    $region34: #{_forward_pallas.1} parent=1 // pred_check
      _
    $region35: #{_forward_pallas.1} parent=1 // pred_check_branch
      %73 = sbr.rel (0) target = $region37
    $region36: #{_forward_pallas.1} parent=1 // pred_region
      %74 = dma.done [#allocation5], 1024
    $region37: #{_forward_pallas.1} parent=1 // pred_fallthru
      _
    // Predicated region
    $region38: #{_forward_pallas.1} parent=1 // pred_check
      _
    $region39: #{_forward_pallas.1} parent=1 // pred_check_branch
      %76 = sbr.rel (0) target = $region41
    $region40: #{_forward_pallas.1} parent=1 // pred_region
      %77 = dma.done [#allocation5], 1024
    $region41: #{_forward_pallas.1} parent=1 // pred_fallthru
      _
    // Predicated region
    $region42: #{_forward_pallas.1} parent=1 // pred_check
      _
    $region43: #{_forward_pallas.1} parent=1 // pred_check_branch
      %79 = sbr.rel (0) target = $region45
    $region44: #{_forward_pallas.1} parent=1 // pred_region
      %80 = dma.done [#allocation8], 1024
    $region45: #{_forward_pallas.1} parent=1 // pred_fallthru
      _
    %v82 = vld [vmem:[%s0] sm:$0xf]
    %v83 = vld [vmem:[%s0 + $0x4] sm:$0xf]
    %v84 = vld [vmem:[#allocation2] sm:$0xf]
    %v85 = vld [vmem:[#allocation2 + $0x4] sm:$0xf]
    %v86 = vld [vmem:[#allocation2 + $0x8] sm:$0xf]
    %v87 = vld [vmem:[#allocation2 + $0xc] sm:$0xf]
    %v88 = vld [vmem:[#allocation2 + $0x10] sm:$0xf]
    %v89 = vld [vmem:[#allocation2 + $0x14] sm:$0xf]
    %v90 = vld [vmem:[#allocation2 + $0x18] sm:$0xf]
    %v91 = vld [vmem:[#allocation2 + $0x1c] sm:$0xf]
    %v92 = vld [vmem:[#allocation2 + $0x20] sm:$0xf]
    %v93 = vld [vmem:[#allocation2 + $0x24] sm:$0xf]
    %v94 = vld [vmem:[#allocation2 + $0x28] sm:$0xf]
    %v95 = vld [vmem:[#allocation2 + $0x2c] sm:$0xf]
    %v96 = vld [vmem:[#allocation2 + $0x30] sm:$0xf]
    %v97 = vld [vmem:[#allocation2 + $0x34] sm:$0xf]
    %v98 = vld [vmem:[#allocation2 + $0x38] sm:$0xf]
    %v99 = vld [vmem:[#allocation2 + $0x3c] sm:$0xf]
    %v100 = vld [vmem:[%s5] sm:$0x1]
    %v101 = vlaneseq
    %v102 = vshrl.u32 %v101, 7
    %v103 = vsub.s32 0, %v102
    %v104 = vrot.slane %v100, %v103
    %v107 = vunpack.c.l.b16 %v82
    %v108 = vunpack.c.l.b16 %v83
    %v109 = vpack.c.b16 %v108, %v107
    %v127 = vunpack.c.l.b16 %v84
    %v128 = vunpack.c.l.b16 %v85
    %v129 = vunpack.c.l.b16 %v86
    %v130 = vunpack.c.l.b16 %v87
    %v131 = vunpack.c.l.b16 %v88
    %v132 = vunpack.c.l.b16 %v89
    %v133 = vunpack.c.l.b16 %v90
    %v134 = vunpack.c.l.b16 %v91
    %v135 = vunpack.c.l.b16 %v92
    %v136 = vunpack.c.l.b16 %v93
    %v137 = vunpack.c.l.b16 %v94
    %v138 = vunpack.c.l.b16 %v95
    %v139 = vunpack.c.l.b16 %v96
    %v140 = vunpack.c.l.b16 %v97
    %v141 = vunpack.c.l.b16 %v98
    %v142 = vunpack.c.l.b16 %v99
    %v143 = vpack.c.b16 %v128, %v127
    %v144 = vpack.c.b16 %v130, %v129
    %v145 = vpack.c.b16 %v132, %v131
    %v146 = vpack.c.b16 %v134, %v133
    %v147 = vpack.c.b16 %v136, %v135
    %v148 = vpack.c.b16 %v138, %v137
    %v149 = vpack.c.b16 %v140, %v139
    %v150 = vpack.c.b16 %v142, %v141
    %159 = vmatprep.subr.bf16.mxu0 0
    %160 = vmatpush1.bf16.msra.mxu0 %v143
    %161 = vmatprep.subr.bf16.mxu0 0
    %162 = vmatpush1.bf16.msra.mxu0 %v144
    %163 = vmatprep.subr.bf16.mxu0 0
    %164 = vmatpush1.bf16.msra.mxu0 %v145
    %165 = vmatprep.subr.bf16.mxu0 0
    %166 = vmatpush1.bf16.msra.mxu0 %v146
    %167 = vmatprep.subr.bf16.mxu0 0
    %168 = vmatpush1.bf16.msra.mxu0 %v147
    %169 = vmatprep.subr.bf16.mxu0 0
    %170 = vmatpush1.bf16.msra.mxu0 %v148
    %171 = vmatprep.subr.bf16.mxu0 0
    %172 = vmatpush1.bf16.msra.mxu0 %v149
    %173 = vmatprep.subr.bf16.mxu0 0
    %174 = vmatpush1.bf16.msra.mxu0 %v150
    %175 = vmatprep.subr.bf16.mxu0 0
    %176 = vmatpush1.bf16.msra.mxu0 0
    %177 = vmatprep.subr.bf16.mxu0 0
    %178 = vmatpush1.bf16.msra.mxu0 0
    %179 = vmatprep.subr.bf16.mxu0 0
    %180 = vmatpush1.bf16.msra.mxu0 0
    %181 = vmatprep.subr.bf16.mxu0 0
    %182 = vmatpush1.bf16.msra.mxu0 0
    %183 = vmatprep.subr.bf16.mxu0 0
    %184 = vmatpush1.bf16.msra.mxu0 0
    %185 = vmatprep.subr.bf16.mxu0 0
    %186 = vmatpush1.bf16.msra.mxu0 0
    %187 = vmatprep.subr.bf16.mxu0 0
    %188 = vmatpush1.bf16.msra.mxu0 0
    %189 = vmatprep.subr.bf16.mxu0 0
    %190 = vmatpush1.bf16.msra.mxu0 0
    %191 = vmatprep.mubr.bf16.mxu0 0
    %192 = vmatmul.mubr.bf16.gmra.mrb[0].mxu0 %v109
    %v193 = vpop.f32.mrb[0].mxu0
    %v194 = vadd.f32 %v104, %v193
    %v195 = vpop.f32.mrb[0].mxu0
    %v196 = vpop.f32.mrb[0].mxu0
    %v197 = vadd.f32 %v104, %v196
    %v198 = vpop.f32.mrb[0].mxu0
    %199 = vdwg.mxu0
    %v200 = vpack.c.bf16 %v197, %v194
    %v201 = vld [vmem:[#allocation4] sm:$0xf]
    %v202 = vld [vmem:[#allocation4 + $0x4] sm:$0xf]
    %v203 = vld [vmem:[#allocation4 + $0x8] sm:$0xf]
    %v204 = vld [vmem:[#allocation4 + $0xc] sm:$0xf]
    %v205 = vld [vmem:[#allocation4 + $0x10] sm:$0xf]
    %v206 = vld [vmem:[#allocation4 + $0x14] sm:$0xf]
    %v207 = vld [vmem:[#allocation4 + $0x18] sm:$0xf]
    %v208 = vld [vmem:[#allocation4 + $0x1c] sm:$0xf]
    %v209 = vld [vmem:[#allocation4 + $0x20] sm:$0xf]
    %v210 = vld [vmem:[#allocation4 + $0x24] sm:$0xf]
    %v211 = vld [vmem:[#allocation4 + $0x28] sm:$0xf]
    %v212 = vld [vmem:[#allocation4 + $0x2c] sm:$0xf]
    %v213 = vld [vmem:[#allocation4 + $0x30] sm:$0xf]
    %v214 = vld [vmem:[#allocation4 + $0x34] sm:$0xf]
    %v215 = vld [vmem:[#allocation4 + $0x38] sm:$0xf]
    %v216 = vld [vmem:[#allocation4 + $0x3c] sm:$0xf]
    %v217 = vld [vmem:[%s6] sm:$0x1]
    %v218 = vlaneseq
    %v219 = vshrl.u32 %v218, 7
    %v220 = vsub.s32 0, %v219
    %v221 = vrot.slane %v217, %v220
    %v238 = vunpack.c.l.b16 %v201
    %v239 = vunpack.c.l.b16 %v202
    %v240 = vunpack.c.l.b16 %v203
    %v241 = vunpack.c.l.b16 %v204
    %v242 = vunpack.c.l.b16 %v205
    %v243 = vunpack.c.l.b16 %v206
    %v244 = vunpack.c.l.b16 %v207
    %v245 = vunpack.c.l.b16 %v208
    %v246 = vunpack.c.l.b16 %v209
    %v247 = vunpack.c.l.b16 %v210
    %v248 = vunpack.c.l.b16 %v211
    %v249 = vunpack.c.l.b16 %v212
    %v250 = vunpack.c.l.b16 %v213
    %v251 = vunpack.c.l.b16 %v214
    %v252 = vunpack.c.l.b16 %v215
    %v253 = vunpack.c.l.b16 %v216
    %v254 = vpack.c.b16 %v239, %v238
    %v255 = vpack.c.b16 %v241, %v240
    %v256 = vpack.c.b16 %v243, %v242
    %v257 = vpack.c.b16 %v245, %v244
    %v258 = vpack.c.b16 %v247, %v246
    %v259 = vpack.c.b16 %v249, %v248
    %v260 = vpack.c.b16 %v251, %v250
    %v261 = vpack.c.b16 %v253, %v252
    %270 = vmatprep.subr.bf16.mxu0 0
    %271 = vmatpush1.bf16.msra.mxu0 %v254
    %272 = vmatprep.subr.bf16.mxu0 0
    %273 = vmatpush1.bf16.msra.mxu0 %v255
    %274 = vmatprep.subr.bf16.mxu0 0
    %275 = vmatpush1.bf16.msra.mxu0 %v256
    %276 = vmatprep.subr.bf16.mxu0 0
    %277 = vmatpush1.bf16.msra.mxu0 %v257
    %278 = vmatprep.subr.bf16.mxu0 0
    %279 = vmatpush1.bf16.msra.mxu0 %v258
    %280 = vmatprep.subr.bf16.mxu0 0
    %281 = vmatpush1.bf16.msra.mxu0 %v259
    %282 = vmatprep.subr.bf16.mxu0 0
    %283 = vmatpush1.bf16.msra.mxu0 %v260
    %284 = vmatprep.subr.bf16.mxu0 0
    %285 = vmatpush1.bf16.msra.mxu0 %v261
    %286 = vmatprep.subr.bf16.mxu0 0
    %287 = vmatpush1.bf16.msra.mxu0 0
    %288 = vmatprep.subr.bf16.mxu0 0
    %289 = vmatpush1.bf16.msra.mxu0 0
    %290 = vmatprep.subr.bf16.mxu0 0
    %291 = vmatpush1.bf16.msra.mxu0 0
    %292 = vmatprep.subr.bf16.mxu0 0
    %293 = vmatpush1.bf16.msra.mxu0 0
    %294 = vmatprep.subr.bf16.mxu0 0
    %295 = vmatpush1.bf16.msra.mxu0 0
    %296 = vmatprep.subr.bf16.mxu0 0
    %297 = vmatpush1.bf16.msra.mxu0 0
    %298 = vmatprep.subr.bf16.mxu0 0
    %299 = vmatpush1.bf16.msra.mxu0 0
    %300 = vmatprep.subr.bf16.mxu0 0
    %301 = vmatpush1.bf16.msra.mxu0 0
    %302 = vmatprep.mubr.bf16.mxu0 0
    %303 = vmatmul.mubr.bf16.gmra.mrb[0].mxu0 %v200
    %v304 = vpop.f32.mrb[0].mxu0
    %v305 = vadd.f32 %v221, %v304
    %v306 = vpop.f32.mrb[0].mxu0
    %v307 = vpop.f32.mrb[0].mxu0
    %v308 = vadd.f32 %v221, %v307
    %v309 = vpop.f32.mrb[0].mxu0
    %310 = vdwg.mxu0
    %v311 = vpack.c.bf16 %v308, %v305
    %v312 = vld [vmem:[#allocation6] sm:$0xf]
    %v313 = vld [vmem:[#allocation6 + $0x4] sm:$0xf]
    %v314 = vld [vmem:[#allocation6 + $0x8] sm:$0xf]
    %v315 = vld [vmem:[#allocation6 + $0xc] sm:$0xf]
    %v316 = vld [vmem:[#allocation6 + $0x10] sm:$0xf]
    %v317 = vld [vmem:[#allocation6 + $0x14] sm:$0xf]
    %v318 = vld [vmem:[#allocation6 + $0x18] sm:$0xf]
    %v319 = vld [vmem:[#allocation6 + $0x1c] sm:$0xf]
    %v320 = vld [vmem:[#allocation6 + $0x20] sm:$0xf]
    %v321 = vld [vmem:[#allocation6 + $0x24] sm:$0xf]
    %v322 = vld [vmem:[#allocation6 + $0x28] sm:$0xf]
    %v323 = vld [vmem:[#allocation6 + $0x2c] sm:$0xf]
    %v324 = vld [vmem:[#allocation6 + $0x30] sm:$0xf]
    %v325 = vld [vmem:[#allocation6 + $0x34] sm:$0xf]
    %v326 = vld [vmem:[#allocation6 + $0x38] sm:$0xf]
    %v327 = vld [vmem:[#allocation6 + $0x3c] sm:$0xf]
    %v328 = vld [vmem:[%s5 + $0x1] sm:$0x1]
    %v329 = vlaneseq
    %v330 = vshrl.u32 %v329, 7
    %v331 = vsub.s32 0, %v330
    %v332 = vrot.slane %v328, %v331
    %v349 = vunpack.c.l.b16 %v312
    %v350 = vunpack.c.l.b16 %v313
    %v351 = vunpack.c.l.b16 %v314
    %v352 = vunpack.c.l.b16 %v315
    %v353 = vunpack.c.l.b16 %v316
    %v354 = vunpack.c.l.b16 %v317
    %v355 = vunpack.c.l.b16 %v318
    %v356 = vunpack.c.l.b16 %v319
    %v357 = vunpack.c.l.b16 %v320
    %v358 = vunpack.c.l.b16 %v321
    %v359 = vunpack.c.l.b16 %v322
    %v360 = vunpack.c.l.b16 %v323
    %v361 = vunpack.c.l.b16 %v324
    %v362 = vunpack.c.l.b16 %v325
    %v363 = vunpack.c.l.b16 %v326
    %v364 = vunpack.c.l.b16 %v327
    %v365 = vpack.c.b16 %v350, %v349
    %v366 = vpack.c.b16 %v352, %v351
    %v367 = vpack.c.b16 %v354, %v353
    %v368 = vpack.c.b16 %v356, %v355
    %v369 = vpack.c.b16 %v358, %v357
    %v370 = vpack.c.b16 %v360, %v359
    %v371 = vpack.c.b16 %v362, %v361
    %v372 = vpack.c.b16 %v364, %v363
    %381 = vmatprep.subr.bf16.mxu0 0
    %382 = vmatpush1.bf16.msra.mxu0 %v365
    %383 = vmatprep.subr.bf16.mxu0 0
    %384 = vmatpush1.bf16.msra.mxu0 %v366
    %385 = vmatprep.subr.bf16.mxu0 0
    %386 = vmatpush1.bf16.msra.mxu0 %v367
    %387 = vmatprep.subr.bf16.mxu0 0
    %388 = vmatpush1.bf16.msra.mxu0 %v368
    %389 = vmatprep.subr.bf16.mxu0 0
    %390 = vmatpush1.bf16.msra.mxu0 %v369
    %391 = vmatprep.subr.bf16.mxu0 0
    %392 = vmatpush1.bf16.msra.mxu0 %v370
    %393 = vmatprep.subr.bf16.mxu0 0
    %394 = vmatpush1.bf16.msra.mxu0 %v371
    %395 = vmatprep.subr.bf16.mxu0 0
    %396 = vmatpush1.bf16.msra.mxu0 %v372
    %397 = vmatprep.subr.bf16.mxu0 0
    %398 = vmatpush1.bf16.msra.mxu0 0
    %399 = vmatprep.subr.bf16.mxu0 0
    %400 = vmatpush1.bf16.msra.mxu0 0
    %401 = vmatprep.subr.bf16.mxu0 0
    %402 = vmatpush1.bf16.msra.mxu0 0
    %403 = vmatprep.subr.bf16.mxu0 0
    %404 = vmatpush1.bf16.msra.mxu0 0
    %405 = vmatprep.subr.bf16.mxu0 0
    %406 = vmatpush1.bf16.msra.mxu0 0
    %407 = vmatprep.subr.bf16.mxu0 0
    %408 = vmatpush1.bf16.msra.mxu0 0
    %409 = vmatprep.subr.bf16.mxu0 0
    %410 = vmatpush1.bf16.msra.mxu0 0
    %411 = vmatprep.subr.bf16.mxu0 0
    %412 = vmatpush1.bf16.msra.mxu0 0
    %413 = vmatprep.mubr.bf16.mxu0 0
    %414 = vmatmul.mubr.bf16.gmra.mrb[0].mxu0 %v311
    %v415 = vpop.f32.mrb[0].mxu0
    %v416 = vadd.f32 %v332, %v415
    %v417 = vpop.f32.mrb[0].mxu0
    %v418 = vpop.f32.mrb[0].mxu0
    %v419 = vadd.f32 %v332, %v418
    %v420 = vpop.f32.mrb[0].mxu0
    %421 = vdwg.mxu0
    %v422 = vpack.c.bf16 %v419, %v416
    %v423 = vld [vmem:[#allocation7] sm:$0xf]
    %v424 = vld [vmem:[#allocation7 + $0x4] sm:$0xf]
    %v425 = vld [vmem:[#allocation7 + $0x8] sm:$0xf]
    %v426 = vld [vmem:[#allocation7 + $0xc] sm:$0xf]
    %v427 = vld [vmem:[#allocation7 + $0x10] sm:$0xf]
    %v428 = vld [vmem:[#allocation7 + $0x14] sm:$0xf]
    %v429 = vld [vmem:[#allocation7 + $0x18] sm:$0xf]
    %v430 = vld [vmem:[#allocation7 + $0x1c] sm:$0xf]
    %v431 = vld [vmem:[#allocation7 + $0x20] sm:$0xf]
    %v432 = vld [vmem:[#allocation7 + $0x24] sm:$0xf]
    %v433 = vld [vmem:[#allocation7 + $0x28] sm:$0xf]
    %v434 = vld [vmem:[#allocation7 + $0x2c] sm:$0xf]
    %v435 = vld [vmem:[#allocation7 + $0x30] sm:$0xf]
    %v436 = vld [vmem:[#allocation7 + $0x34] sm:$0xf]
    %v437 = vld [vmem:[#allocation7 + $0x38] sm:$0xf]
    %v438 = vld [vmem:[#allocation7 + $0x3c] sm:$0xf]
    %v439 = vld [vmem:[%s6 + $0x1] sm:$0x1]
    %v440 = vlaneseq
    %v441 = vshrl.u32 %v440, 7
    %v442 = vsub.s32 0, %v441
    %v443 = vrot.slane %v439, %v442
    %v460 = vunpack.c.l.b16 %v423
    %v461 = vunpack.c.l.b16 %v424
    %v462 = vunpack.c.l.b16 %v425
    %v463 = vunpack.c.l.b16 %v426
    %v464 = vunpack.c.l.b16 %v427
    %v465 = vunpack.c.l.b16 %v428
    %v466 = vunpack.c.l.b16 %v429
    %v467 = vunpack.c.l.b16 %v430
    %v468 = vunpack.c.l.b16 %v431
    %v469 = vunpack.c.l.b16 %v432
    %v470 = vunpack.c.l.b16 %v433
    %v471 = vunpack.c.l.b16 %v434
    %v472 = vunpack.c.l.b16 %v435
    %v473 = vunpack.c.l.b16 %v436
    %v474 = vunpack.c.l.b16 %v437
    %v475 = vunpack.c.l.b16 %v438
    %v476 = vpack.c.b16 %v461, %v460
    %v477 = vpack.c.b16 %v463, %v462
    %v478 = vpack.c.b16 %v465, %v464
    %v479 = vpack.c.b16 %v467, %v466
    %v480 = vpack.c.b16 %v469, %v468
    %v481 = vpack.c.b16 %v471, %v470
    %v482 = vpack.c.b16 %v473, %v472
    %v483 = vpack.c.b16 %v475, %v474
    %492 = vmatprep.subr.bf16.mxu0 0
    %493 = vmatpush1.bf16.msra.mxu0 %v476
    %494 = vmatprep.subr.bf16.mxu0 0
    %495 = vmatpush1.bf16.msra.mxu0 %v477
    %496 = vmatprep.subr.bf16.mxu0 0
    %497 = vmatpush1.bf16.msra.mxu0 %v478
    %498 = vmatprep.subr.bf16.mxu0 0
    %499 = vmatpush1.bf16.msra.mxu0 %v479
    %500 = vmatprep.subr.bf16.mxu0 0
    %501 = vmatpush1.bf16.msra.mxu0 %v480
    %502 = vmatprep.subr.bf16.mxu0 0
    %503 = vmatpush1.bf16.msra.mxu0 %v481
    %504 = vmatprep.subr.bf16.mxu0 0
    %505 = vmatpush1.bf16.msra.mxu0 %v482
    %506 = vmatprep.subr.bf16.mxu0 0
    %507 = vmatpush1.bf16.msra.mxu0 %v483
    %508 = vmatprep.subr.bf16.mxu0 0
    %509 = vmatpush1.bf16.msra.mxu0 0
    %510 = vmatprep.subr.bf16.mxu0 0
    %511 = vmatpush1.bf16.msra.mxu0 0
    %512 = vmatprep.subr.bf16.mxu0 0
    %513 = vmatpush1.bf16.msra.mxu0 0
    %514 = vmatprep.subr.bf16.mxu0 0
    %515 = vmatpush1.bf16.msra.mxu0 0
    %516 = vmatprep.subr.bf16.mxu0 0
    %517 = vmatpush1.bf16.msra.mxu0 0
    %518 = vmatprep.subr.bf16.mxu0 0
    %519 = vmatpush1.bf16.msra.mxu0 0
    %520 = vmatprep.subr.bf16.mxu0 0
    %521 = vmatpush1.bf16.msra.mxu0 0
    %522 = vmatprep.subr.bf16.mxu0 0
    %523 = vmatpush1.bf16.msra.mxu0 0
    %524 = vmatprep.mubr.bf16.mxu0 0
    %525 = vmatmul.mubr.bf16.gmra.mrb[0].mxu0 %v422
    %v526 = vpop.f32.mrb[0].mxu0
    %v527 = vadd.f32 %v443, %v526
    %v528 = vpop.f32.mrb[0].mxu0
    %v529 = vpop.f32.mrb[0].mxu0
    %v530 = vadd.f32 %v443, %v529
    %v531 = vpop.f32.mrb[0].mxu0
    %532 = vdwg.mxu0
    %533 = vst [vmem:[%s7] sm:$0xff] %v527
    %534 = vst [vmem:[%s7 + $0x8] sm:$0xff] %v530
    // Predicated region
    $region46: #{_forward_pallas.1} parent=1 // pred_check
      _
    $region47: #{_forward_pallas.1} parent=1 // pred_check_branch
      %536 = sbr.rel (0) target = $region49
    $region48: #{_forward_pallas.1} parent=1 // pred_region
      _
    $region49: #{_forward_pallas.1} parent=1 // pred_fallthru
      _
    // Predicated region
    $region50: #{_forward_pallas.1} parent=1 // pred_check
      _
    $region51: #{_forward_pallas.1} parent=1 // pred_check_branch
      %538 = sbr.rel (0) target = $region53
    $region52: #{_forward_pallas.1} parent=1 // pred_region
      _
    $region53: #{_forward_pallas.1} parent=1 // pred_fallthru
      _
    %539 = vsyncpa [#allocation3], 1
    %540 = vsyncpa [#allocation5], 1
    %541 = vsyncpa [#allocation8], 1

</llo_original>
